<compile_context>
chip_gen: v5e
topology: v5e:2x2
jax: 0.10.0
libtpu: 0.0.40
codegen_flags: <defaults>
</compile_context>

<pallas_src>
import jax
import jax.numpy as jnp
import numpy as np
from jax.experimental import pallas as pl
from jax.experimental.pallas import tpu as pltpu

NEG_FILL = -10000.0
L_CHUNK = 128  # sublanes of L processed per slab (bounds the live temporary)


# ---------------------------------------------------------------------------
# VMEM sizing helpers (layout-aware)
# ---------------------------------------------------------------------------

def _round_up(x, m):
    return ((x + m - 1) // m) * m


def _sub_multiple(dtype):
    # sublane packing: 8 for 4-byte, 16 for 2-byte, 32 for 1-byte dtypes
    return 8 * max(1, 4 // jnp.dtype(dtype).itemsize)


def _vmem_block_bytes(shape, dtype):
    """Bytes a block really occupies in VMEM (last two dims padded to (sub,128))."""
    isz = jnp.dtype(dtype).itemsize
    sub = _sub_multiple(dtype)
    if len(shape) == 1:
        return _round_up(shape[0] * isz, 512)
    *outer, s, l = shape
    n_outer = int(np.prod(outer)) if outer else 1
    return n_outer * _round_up(s, sub) * _round_up(l, 128) * isz


def _step_vmem_bytes(tb, L, D, n_pairs, info_dtype, holder_dtype):
    """Double-buffered VMEM footprint of one grid step, incl. padding + headroom."""
    total = 0
    total += 2 * n_pairs * _vmem_block_bytes((tb, L, D), info_dtype)   # info in
    total += 2 * n_pairs * _vmem_block_bytes((tb, L, 1), holder_dtype)  # holder in (lane-padded to 128!)
    total += 2 * _vmem_block_bytes((tb, n_pairs, D), info_dtype)        # info out
    total += 2 * _vmem_block_bytes((tb, n_pairs), jnp.int32)            # mask out
    total += 2 * _vmem_block_bytes((tb, min(L, L_CHUNK), D), jnp.float32)  # slab temporaries
    total += 2 * 1024 * 1024                                            # Mosaic internal scratch headroom
    return total


def _vmem_budget_bytes():
    """~75% of this chip's VMEM: ~96 MiB on v5e/v6e (128 MiB), ~48 MiB on v7x (64 MiB)."""
    cap = 64 * 1024 * 1024  # conservative fallback (v7x-sized)
    try:
        info = pltpu.get_tpu_info()
        cap_attr = getattr(info, "vmem_capacity_bytes", None)
        if cap_attr:
            cap = int(cap_attr)
    except Exception:
        pass
    return int(cap * 0.75)


def _pick_tb(B, step_bytes_fn, budget):
    """Largest batch tile (multiple of 8, or B itself for tiny B) fitting the budget.

    For B >= 16 the tile is capped near B/2 so the grid has >= 2 steps and
    both of v7x's TensorCores get work via the 'parallel' batch axis.
    """
    if B <= 8:
        cands = [B]
    elif B < 16:
        cands = sorted({B, 8}, reverse=True)
    else:
        hi = min(B, _round_up((B + 1) // 2, 8))
        cands = list(range((hi // 8) * 8, 7, -8))
    for tb in cands:
        if step_bytes_fn(tb) <= budget:
            return tb
    raise ValueError(
        f"MergeMax: no batch tile fits the VMEM budget ({budget} bytes). "
        "TODO(synk): add a D-axis grid split for very large L*D shapes.")


# ---------------------------------------------------------------------------
# Kernel
# ---------------------------------------------------------------------------

def _make_kernel(n_pairs, L):
    """Kernel over one batch tile.

    refs = (info_0..info_{N-1}, holder_0..holder_{N-1}, out_info, out_mask)
      info_n   : (tB, L, D)   L on sublanes, D on lanes
      holder_n : (tB, L, 1)   L on sublanes (matches info layout)
      out_info : (tB, N, D)
      out_mask : (tB, N) int32
    """
    starts = list(range(0, L, L_CHUNK))

    def kernel(*refs):
        info_refs = refs[:n_pairs]
        holder_refs = refs[n_pairs:2 * n_pairs]
        out_ref = refs[2 * n_pairs]
        mask_ref = refs[2 * n_pairs + 1]

        for n in range(n_pairs):
            fill = jnp.asarray(NEG_FILL, dtype=info_refs[n].dtype)
            acc = None      # (tB, D) running max of masked info
            pad_acc = None  # (tB, 1) running "any padding" indicator
            for l0 in starts:
                lc = min(L_CHUNK, L - l0)
                info_slab = info_refs[n][:, l0:l0 + lc, :]     # (tB, lc, D)
                hold_slab = holder_refs[n][:, l0:l0 + lc, :]   # (tB, lc, 1)
                pad_slab = hold_slab == 0                      # (tB, lc, 1)
                # lane-broadcast select, then sublane reduction over this slab only
                masked = jnp.where(pad_slab, fill, info_slab)
                part = jnp.max(masked, axis=-2)                           # (tB, D)
                flag = jnp.max(pad_slab.astype(jnp.float32), axis=-2)     # (tB, 1)
                acc = part if acc is None else jnp.maximum(acc, part)
                pad_acc = flag if pad_acc is None else jnp.maximum(pad_acc, flag)
            out_ref[:, n, :] = acc.astype(out_ref.dtype)
            mask_ref[:, n:n + 1] = (pad_acc > 0.5).astype(jnp.int32)

    return kernel


# ---------------------------------------------------------------------------
# Wrapper
# ---------------------------------------------------------------------------

def merge_max(info_holder_list):
    """info_holder_list: list of (info (B, L, D), holder (B, L)) pairs.

    Returns: info (B, N, D), mask (B, N) bool.
    """
    n_pairs = len(info_holder_list)
    infos = [p[0] for p in info_holder_list]
    holders = [p[1] for p in info_holder_list]

    B, L, D = infos[0].shape
    dtype = infos[0].dtype

    # Holder as (B, L, 1): metadata-only reshape; puts L on sublanes in-kernel
    # so the masked fill is a pure lane-broadcast select (no relayout).
    holders3 = [h.reshape(B, L, 1) for h in holders]
    holder_dtype = holders3[0].dtype

    budget = _vmem_budget_bytes()
    tB = _pick_tb(
        B,
        lambda tb: _step_vmem_bytes(tb, L, D, n_pairs, dtype, holder_dtype),
        budget,
    )
    grid = (pl.cdiv(B, tB),)

    in_specs = (
        [pl.BlockSpec((tB, L, D), lambda b: (b, 0, 0)) for _ in range(n_pairs)]
        + [pl.BlockSpec((tB, L, 1), lambda b: (b, 0, 0)) for _ in range(n_pairs)]
    )
    out_specs = (
        pl.BlockSpec((tB, n_pairs, D), lambda b: (b, 0, 0)),
        pl.BlockSpec((tB, n_pairs), lambda b: (b, 0)),
    )
    out_shape = (
        jax.ShapeDtypeStruct((B, n_pairs, D), dtype),
        jax.ShapeDtypeStruct((B, n_pairs), jnp.int32),
    )

    info_out, mask_i32 = pl.pallas_call(
        _make_kernel(n_pairs, L),
        out_shape=out_shape,
        grid=grid,
        in_specs=in_specs,
        out_specs=out_specs,
        compiler_params=pltpu.CompilerParams(
            dimension_semantics=("parallel",),
            vmem_limit_bytes=int(budget),
        ),
    )(*infos, *holders3)

    return info_out, mask_i32.astype(jnp.bool_)


# ---------------------------------------------------------------------------
# Reference + self-test
# ---------------------------------------------------------------------------

def _reference(info_holder_list):
    info_list, mask_list = [], []
    for info, holder in info_holder_list:
        leng_mask = holder == 0
        info = jnp.where(leng_mask[..., None], jnp.asarray(NEG_FILL, info.dtype), info)
        info_list.append(jnp.max(info, axis=-2)[..., None, :])    # (B, 1, D)
        mask_list.append(jnp.max(leng_mask, axis=-1)[..., None])  # (B, 1)
    return jnp.concatenate(info_list, axis=-2), jnp.concatenate(mask_list, axis=-1)


if __name__ == "__main__":
    key = jax.random.PRNGKey(0)
    B, L, D, N = 2, 8, 32, 3

    pairs = []
    for i in range(N):
        key, k1, k2 = jax.random.split(key, 3)
        info = jax.random.normal(k1, (B, L, D), dtype=jnp.float32)
        # holder: length-like values with some zero (padding) positions
        holder = (jax.random.uniform(k2, (B, L)) > 0.35).astype(jnp.float32) * (i + 1.0)
        pairs.append((info, holder))

    info_out, mask_out = merge_max(pairs)
    jax.block_until_ready((info_out, mask_out))

    ref_info, ref_mask = _reference(pairs)
    np.testing.assert_allclose(np.asarray(info_out), np.asarray(ref_info),
                               rtol=1e-6, atol=1e-6)
    np.testing.assert_array_equal(np.asarray(mask_out), np.asarray(ref_mask))

    print("KERNEL_OK")
</pallas_src>

<mosaic_0001>
module attributes {stable_mosaic.version = 11 : i64} {
  func.func @kernel(%arg0: i32, %arg1: memref<2x8x32xf32, #tpu.memory_space<vmem>>, %arg2: memref<2x8x32xf32, #tpu.memory_space<vmem>>, %arg3: memref<2x8x32xf32, #tpu.memory_space<vmem>>, %arg4: memref<2x8x1xf32, #tpu.memory_space<vmem>>, %arg5: memref<2x8x1xf32, #tpu.memory_space<vmem>>, %arg6: memref<2x8x1xf32, #tpu.memory_space<vmem>>, %arg7: memref<2x3x32xf32, #tpu.memory_space<vmem>>, %arg8: memref<2x3xi32, #tpu.memory_space<vmem>>) attributes {dimension_semantics = [#tpu.dimension_semantics<parallel>], iteration_bounds = array<i64: 1>, scalar_prefetch = 0 : i64, scratch_operands = 0 : i64, tpu.core_type = #tpu.core_type<tc>, window_params = [{transform_indices = @transform_0, window_bounds = array<i64: 2, 8, 32>}, {transform_indices = @transform_1, window_bounds = array<i64: 2, 8, 32>}, {transform_indices = @transform_2, window_bounds = array<i64: 2, 8, 32>}, {transform_indices = @transform_3, window_bounds = array<i64: 2, 8, 1>}, {transform_indices = @transform_4, window_bounds = array<i64: 2, 8, 1>}, {transform_indices = @transform_5, window_bounds = array<i64: 2, 8, 1>}, {transform_indices = @transform_6, window_bounds = array<i64: 2, 3, 32>}, {transform_indices = @transform_7, window_bounds = array<i64: 2, 3>}]} {
    %c0 = arith.constant 0 : index
    %c0_0 = arith.constant 0 : index
    %c0_1 = arith.constant 0 : index
    %0 = vector.load %arg1[%c0, %c0_0, %c0_1] : memref<2x8x32xf32, #tpu.memory_space<vmem>>, vector<2x8x32xf32>
    %c0_2 = arith.constant 0 : index
    %c0_3 = arith.constant 0 : index
    %c0_4 = arith.constant 0 : index
    %1 = vector.load %arg4[%c0_2, %c0_3, %c0_4] : memref<2x8x1xf32, #tpu.memory_space<vmem>>, vector<2x8x1xf32>
    %cst = arith.constant 0.000000e+00 : f32
    %2 = vector.broadcast %cst : f32 to vector<2x8x1xf32>
    %3 = arith.cmpf oeq, %1, %2 : vector<2x8x1xf32>
    %cst_5 = arith.constant -1.000000e+04 : f32
    %4 = vector.shape_cast %3 : vector<2x8x1xi1> to vector<2x8x1xi1>
    %5 = vector.broadcast %4 : vector<2x8x1xi1> to vector<2x8x32xi1>
    %6 = vector.broadcast %cst_5 : f32 to vector<2x8x32xf32>
    %7 = arith.select %5, %6, %0 : vector<2x8x32xi1>, vector<2x8x32xf32>
    %cst_6 = arith.constant dense<0xFF800000> : vector<2x32xf32>
    %8 = vector.multi_reduction <maximumf>, %7, %cst_6 [1] : vector<2x8x32xf32> to vector<2x32xf32>
    %9 = arith.extui %3 : vector<2x8x1xi1> to vector<2x8x1xi32>
    %10 = arith.sitofp %9 : vector<2x8x1xi32> to vector<2x8x1xf32>
    %cst_7 = arith.constant dense<0xFF800000> : vector<2x1xf32>
    %11 = vector.multi_reduction <maximumf>, %10, %cst_7 [1] : vector<2x8x1xf32> to vector<2x1xf32>
    %c0_8 = arith.constant 0 : index
    %c0_9 = arith.constant 0 : index
    %c0_10 = arith.constant 0 : index
    %12 = vector.load %arg7[%c0_8, %c0_9, %c0_10] : memref<2x3x32xf32, #tpu.memory_space<vmem>>, vector<2x1x32xf32>
    %13 = vector.shape_cast %12 : vector<2x1x32xf32> to vector<2x32xf32>
    %14 = vector.shape_cast %8 : vector<2x32xf32> to vector<2x1x32xf32>
    tpu.vector_store %arg7[%c0_8, %c0_9, %c0_10], %14 {strides = array<i32>} : memref<2x3x32xf32, #tpu.memory_space<vmem>>, vector<2x1x32xf32>,
    %cst_11 = arith.constant 5.000000e-01 : f32
    %15 = vector.broadcast %cst_11 : f32 to vector<2x1xf32>
    %16 = arith.cmpf ogt, %11, %15 : vector<2x1xf32>
    %17 = arith.extui %16 : vector<2x1xi1> to vector<2x1xi32>
    %c0_12 = arith.constant 0 : index
    %c0_13 = arith.constant 0 : index
    %18 = vector.load %arg8[%c0_12, %c0_13] : memref<2x3xi32, #tpu.memory_space<vmem>>, vector<2x1xi32>
    tpu.vector_store %arg8[%c0_12, %c0_13], %17 {strides = array<i32>} : memref<2x3xi32, #tpu.memory_space<vmem>>, vector<2x1xi32>,
    %c0_14 = arith.constant 0 : index
    %c0_15 = arith.constant 0 : index
    %c0_16 = arith.constant 0 : index
    %19 = vector.load %arg2[%c0_14, %c0_15, %c0_16] : memref<2x8x32xf32, #tpu.memory_space<vmem>>, vector<2x8x32xf32>
    %c0_17 = arith.constant 0 : index
    %c0_18 = arith.constant 0 : index
    %c0_19 = arith.constant 0 : index
    %20 = vector.load %arg5[%c0_17, %c0_18, %c0_19] : memref<2x8x1xf32, #tpu.memory_space<vmem>>, vector<2x8x1xf32>
    %cst_20 = arith.constant 0.000000e+00 : f32
    %21 = vector.broadcast %cst_20 : f32 to vector<2x8x1xf32>
    %22 = arith.cmpf oeq, %20, %21 : vector<2x8x1xf32>
    %cst_21 = arith.constant -1.000000e+04 : f32
    %23 = vector.shape_cast %22 : vector<2x8x1xi1> to vector<2x8x1xi1>
    %24 = vector.broadcast %23 : vector<2x8x1xi1> to vector<2x8x32xi1>
    %25 = vector.broadcast %cst_21 : f32 to vector<2x8x32xf32>
    %26 = arith.select %24, %25, %19 : vector<2x8x32xi1>, vector<2x8x32xf32>
    %cst_22 = arith.constant dense<0xFF800000> : vector<2x32xf32>
    %27 = vector.multi_reduction <maximumf>, %26, %cst_22 [1] : vector<2x8x32xf32> to vector<2x32xf32>
    %28 = arith.extui %22 : vector<2x8x1xi1> to vector<2x8x1xi32>
    %29 = arith.sitofp %28 : vector<2x8x1xi32> to vector<2x8x1xf32>
    %cst_23 = arith.constant dense<0xFF800000> : vector<2x1xf32>
    %30 = vector.multi_reduction <maximumf>, %29, %cst_23 [1] : vector<2x8x1xf32> to vector<2x1xf32>
    %c0_24 = arith.constant 0 : index
    %c1 = arith.constant 1 : index
    %c0_25 = arith.constant 0 : index
    %31 = vector.load %arg7[%c0_24, %c1, %c0_25] : memref<2x3x32xf32, #tpu.memory_space<vmem>>, vector<2x1x32xf32>
    %32 = vector.shape_cast %31 : vector<2x1x32xf32> to vector<2x32xf32>
    %33 = vector.shape_cast %27 : vector<2x32xf32> to vector<2x1x32xf32>
    tpu.vector_store %arg7[%c0_24, %c1, %c0_25], %33 {strides = array<i32>} : memref<2x3x32xf32, #tpu.memory_space<vmem>>, vector<2x1x32xf32>,
    %cst_26 = arith.constant 5.000000e-01 : f32
    %34 = vector.broadcast %cst_26 : f32 to vector<2x1xf32>
    %35 = arith.cmpf ogt, %30, %34 : vector<2x1xf32>
    %36 = arith.extui %35 : vector<2x1xi1> to vector<2x1xi32>
    %c0_27 = arith.constant 0 : index
    %c1_28 = arith.constant 1 : index
    %37 = vector.load %arg8[%c0_27, %c1_28] : memref<2x3xi32, #tpu.memory_space<vmem>>, vector<2x1xi32>
    tpu.vector_store %arg8[%c0_27, %c1_28], %36 {strides = array<i32>} : memref<2x3xi32, #tpu.memory_space<vmem>>, vector<2x1xi32>,
    %c0_29 = arith.constant 0 : index
    %c0_30 = arith.constant 0 : index
    %c0_31 = arith.constant 0 : index
    %38 = vector.load %arg3[%c0_29, %c0_30, %c0_31] : memref<2x8x32xf32, #tpu.memory_space<vmem>>, vector<2x8x32xf32>
    %c0_32 = arith.constant 0 : index
    %c0_33 = arith.constant 0 : index
    %c0_34 = arith.constant 0 : index
    %39 = vector.load %arg6[%c0_32, %c0_33, %c0_34] : memref<2x8x1xf32, #tpu.memory_space<vmem>>, vector<2x8x1xf32>
    %cst_35 = arith.constant 0.000000e+00 : f32
    %40 = vector.broadcast %cst_35 : f32 to vector<2x8x1xf32>
    %41 = arith.cmpf oeq, %39, %40 : vector<2x8x1xf32>
    %cst_36 = arith.constant -1.000000e+04 : f32
    %42 = vector.shape_cast %41 : vector<2x8x1xi1> to vector<2x8x1xi1>
    %43 = vector.broadcast %42 : vector<2x8x1xi1> to vector<2x8x32xi1>
    %44 = vector.broadcast %cst_36 : f32 to vector<2x8x32xf32>
    %45 = arith.select %43, %44, %38 : vector<2x8x32xi1>, vector<2x8x32xf32>
    %cst_37 = arith.constant dense<0xFF800000> : vector<2x32xf32>
    %46 = vector.multi_reduction <maximumf>, %45, %cst_37 [1] : vector<2x8x32xf32> to vector<2x32xf32>
    %47 = arith.extui %41 : vector<2x8x1xi1> to vector<2x8x1xi32>
    %48 = arith.sitofp %47 : vector<2x8x1xi32> to vector<2x8x1xf32>
    %cst_38 = arith.constant dense<0xFF800000> : vector<2x1xf32>
    %49 = vector.multi_reduction <maximumf>, %48, %cst_38 [1] : vector<2x8x1xf32> to vector<2x1xf32>
    %c0_39 = arith.constant 0 : index
    %c2 = arith.constant 2 : index
    %c0_40 = arith.constant 0 : index
    %50 = vector.load %arg7[%c0_39, %c2, %c0_40] : memref<2x3x32xf32, #tpu.memory_space<vmem>>, vector<2x1x32xf32>
    %51 = vector.shape_cast %50 : vector<2x1x32xf32> to vector<2x32xf32>
    %52 = vector.shape_cast %46 : vector<2x32xf32> to vector<2x1x32xf32>
    tpu.vector_store %arg7[%c0_39, %c2, %c0_40], %52 {strides = array<i32>} : memref<2x3x32xf32, #tpu.memory_space<vmem>>, vector<2x1x32xf32>,
    %cst_41 = arith.constant 5.000000e-01 : f32
    %53 = vector.broadcast %cst_41 : f32 to vector<2x1xf32>
    %54 = arith.cmpf ogt, %49, %53 : vector<2x1xf32>
    %55 = arith.extui %54 : vector<2x1xi1> to vector<2x1xi32>
    %c0_42 = arith.constant 0 : index
    %c2_43 = arith.constant 2 : index
    %56 = vector.load %arg8[%c0_42, %c2_43] : memref<2x3xi32, #tpu.memory_space<vmem>>, vector<2x1xi32>
    tpu.vector_store %arg8[%c0_42, %c2_43], %55 {strides = array<i32>} : memref<2x3xi32, #tpu.memory_space<vmem>>, vector<2x1xi32>,
    return
  }
  func.func @transform_0(%arg0: i32) -> (i32, i32, i32) {
    %c0_i32 = arith.constant 0 : i32
    %c0_i32_0 = arith.constant 0 : i32
    %c0_i32_1 = arith.constant 0 : i32
    return %arg0, %c0_i32, %c0_i32_0 : i32, i32, i32
  }
  func.func @transform_1(%arg0: i32) -> (i32, i32, i32) {
    %c0_i32 = arith.constant 0 : i32
    %c0_i32_0 = arith.constant 0 : i32
    %c0_i32_1 = arith.constant 0 : i32
    return %arg0, %c0_i32, %c0_i32_0 : i32, i32, i32
  }
  func.func @transform_2(%arg0: i32) -> (i32, i32, i32) {
    %c0_i32 = arith.constant 0 : i32
    %c0_i32_0 = arith.constant 0 : i32
    %c0_i32_1 = arith.constant 0 : i32
    return %arg0, %c0_i32, %c0_i32_0 : i32, i32, i32
  }
  func.func @transform_3(%arg0: i32) -> (i32, i32, i32) {
    %c0_i32 = arith.constant 0 : i32
    %c0_i32_0 = arith.constant 0 : i32
    %c0_i32_1 = arith.constant 0 : i32
    return %arg0, %c0_i32, %c0_i32_0 : i32, i32, i32
  }
  func.func @transform_4(%arg0: i32) -> (i32, i32, i32) {
    %c0_i32 = arith.constant 0 : i32
    %c0_i32_0 = arith.constant 0 : i32
    %c0_i32_1 = arith.constant 0 : i32
    return %arg0, %c0_i32, %c0_i32_0 : i32, i32, i32
  }
  func.func @transform_5(%arg0: i32) -> (i32, i32, i32) {
    %c0_i32 = arith.constant 0 : i32
    %c0_i32_0 = arith.constant 0 : i32
    %c0_i32_1 = arith.constant 0 : i32
    return %arg0, %c0_i32, %c0_i32_0 : i32, i32, i32
  }
  func.func @transform_6(%arg0: i32) -> (i32, i32, i32) {
    %c0_i32 = arith.constant 0 : i32
    %c0_i32_0 = arith.constant 0 : i32
    %c0_i32_1 = arith.constant 0 : i32
    return %arg0, %c0_i32, %c0_i32_0 : i32, i32, i32
  }
  func.func @transform_7(%arg0: i32) -> (i32, i32) {
    %c0_i32 = arith.constant 0 : i32
    %c0_i32_0 = arith.constant 0 : i32
    return %arg0, %c0_i32 : i32, i32
  }
}

</mosaic_0001>

<llo_original>
// kernel: tpu_custom_call.1
$region0: #{tpu_custom_call.1}
  #allocation0 [shape = 'u32[]', space=smem, size = 0x4, offset = 0x4, fixed_abs, tag = 'smem constant byte address 0x4 - core index']
  #allocation1 [shape = 'u32[72,128]{1,0:T(1,128)}', space=vmem, size = 0x9000, scoped, tag = 'internal scratch']
  %s0 = inlined_call_operand.vmem [shape: f32[2,8,32], index: 0, kind: input, shape index: {}]
  %s1 = inlined_call_operand.vmem [shape: f32[2,8,32], index: 1, kind: input, shape index: {}]
  %s2 = inlined_call_operand.vmem [shape: f32[2,8,32], index: 2, kind: input, shape index: {}]
  %s3 = inlined_call_operand.vmem [shape: f32[2,8,1], index: 3, kind: input, shape index: {}]
  %s4 = inlined_call_operand.vmem [shape: f32[2,8,1], index: 4, kind: input, shape index: {}]
  %s5 = inlined_call_operand.vmem [shape: f32[2,8,1], index: 5, kind: input, shape index: {}]
  %s6 = inlined_call_operand.vmem [shape: f32[2,3,32], index: 6, kind: output, shape index: {0}]
  %s7 = inlined_call_operand.hbm [shape: s32[2,3], index: 7, kind: output, shape index: {1}]
  %8 = xla_tuple %s6, %s7
  %s9 = sld [smem:[#allocation0]]
  $region42: #{tpu_custom_call.1} parent=0
    _
  %s11 = ssub.s32 1, %s9
  %s12 = scalar_select 0, %s11, %s9
  $region1: #{tpu_custom_call.1} parent=0
    #allocation2 [shape = 'u8[1024]{0}', space=vmem, size = 0x400, scoped, tag = 'output window, operand 1, single buffered']
    #allocation3 [shape = 's32[1]{0}', space=sflag, size = 0x4, scoped, tag = 'scoped memory for tpu_custom_call.1']
    %13 = vsyncpa [#allocation3], 0
    // Predicated region
    $region2: #{tpu_custom_call.1} parent=1 // pred_check
      _
    $region3: #{tpu_custom_call.1} parent=1 // pred_check_branch
      %15 = sbr.rel (0) target = $region5
    $region4: #{tpu_custom_call.1} parent=1 // pred_region
      _
    $region5: #{tpu_custom_call.1} parent=1 // pred_fallthru
      _
    // Predicated region
    $region6: #{tpu_custom_call.1} parent=1 // pred_check
      _
    $region7: #{tpu_custom_call.1} parent=1 // pred_check_branch
      %17 = sbr.rel (0) target = $region9
    $region8: #{tpu_custom_call.1} parent=1 // pred_region
      _
    $region9: #{tpu_custom_call.1} parent=1 // pred_fallthru
      _
    // Predicated region
    $region10: #{tpu_custom_call.1} parent=1 // pred_check
      _
    $region11: #{tpu_custom_call.1} parent=1 // pred_check_branch
      %19 = sbr.rel (0) target = $region13
    $region12: #{tpu_custom_call.1} parent=1 // pred_region
      _
    $region13: #{tpu_custom_call.1} parent=1 // pred_fallthru
      _
    // Predicated region
    $region14: #{tpu_custom_call.1} parent=1 // pred_check
      _
    $region15: #{tpu_custom_call.1} parent=1 // pred_check_branch
      %21 = sbr.rel (0) target = $region17
    $region16: #{tpu_custom_call.1} parent=1 // pred_region
      _
    $region17: #{tpu_custom_call.1} parent=1 // pred_fallthru
      _
    // Predicated region
    $region18: #{tpu_custom_call.1} parent=1 // pred_check
      _
    $region19: #{tpu_custom_call.1} parent=1 // pred_check_branch
      %23 = sbr.rel (0) target = $region21
    $region20: #{tpu_custom_call.1} parent=1 // pred_region
      _
    $region21: #{tpu_custom_call.1} parent=1 // pred_fallthru
      _
    // Predicated region
    $region22: #{tpu_custom_call.1} parent=1 // pred_check
      _
    $region23: #{tpu_custom_call.1} parent=1 // pred_check_branch
      %25 = sbr.rel (0) target = $region25
    $region24: #{tpu_custom_call.1} parent=1 // pred_region
      _
    $region25: #{tpu_custom_call.1} parent=1 // pred_fallthru
      _
    %v26 = vld [vmem:[%s0] sm:$0xff]
    %v27 = vld [vmem:[%s0 + $0x8] sm:$0xff]
    %v28 = vld [vmem:[%s3] sm:$0xff]
    %v29 = vld [vmem:[%s3 + $0x8] sm:$0xff]
    %vm30 = vcmp.eq.f32.partialorder %v28, 0.0
    %vm31 = vcmp.eq.f32.partialorder %v29, 0.0
    %v32 = vsel %vm30, 1, 0
    %v33 = vsel %vm31, 1, 0
    %34 = vset.pattern.permute.xlu0 0
    %35 = vperm.xlu0 %34, %v32
    %v36 = vpop.permute.xlu0 %35
    %37 = vset.pattern.permute.xlu0 0
    %38 = vperm.xlu0 %37, %v33
    %v39 = vpop.permute.xlu0 %38
    %vm40 = vcmp.eq.s32.totalorder %v36, 1
    %vm41 = vcmp.eq.s32.totalorder %v39, 1
    %v42 = vsel %vm40, -10000.0, %v26
    %v43 = vsel %vm41, -10000.0, %v27
    %vm44 = vcmask 261120
    %v45 = vsel %vm44, %v42, -inf
    %v46 = vrot.slane %v45, 4
    %v47 = vmax.f32 %v45, %v46
    %v48 = vrot.slane %v47, 2
    %v49 = vmax.f32 %v47, %v48
    %v50 = vrot.slane %v49, 1
    %v51 = vmax.f32 %v49, %v50
    %v52 = vsel %vm44, %v43, -inf
    %v53 = vrot.slane %v52, 4
    %v54 = vmax.f32 %v52, %v53
    %v55 = vrot.slane %v54, 2
    %v56 = vmax.f32 %v54, %v55
    %v57 = vrot.slane %v56, 1
    %v58 = vmax.f32 %v56, %v57
    %v59 = vcvt.s32.f32 %v32
    %v60 = vcvt.s32.f32 %v33
    %vm61 = vcmask 7168
    %v62 = vsel %vm61, %v59, -inf
    %v63 = vrot.slane %v62, 4
    %v64 = vmax.f32 %v62, %v63
    %v65 = vrot.slane %v64, 2
    %v66 = vmax.f32 %v64, %v65
    %v67 = vrot.slane %v66, 1
    %v68 = vmax.f32 %v66, %v67
    %v69 = vsel %vm61, %v60, -inf
    %v70 = vrot.slane %v69, 4
    %v71 = vmax.f32 %v69, %v70
    %v72 = vrot.slane %v71, 2
    %v73 = vmax.f32 %v71, %v72
    %v74 = vrot.slane %v73, 1
    %v75 = vmax.f32 %v73, %v74
    %vm76 = vcmask 253952
    %77 = vst.msk [vmem:[%s6] sm:$0x1] %vm76, %v51
    %78 = vst.msk [vmem:[%s6 + $0x4] sm:$0x1] %vm76, %v58
    %vm79 = vcmp.gt.f32.partialorder %v68, 0.5
    %vm80 = vcmp.gt.f32.partialorder %v75, 0.5
    %v81 = vsel %vm79, 1, 0
    %v82 = vsel %vm80, 1, 0
    %vm83 = vcmask 1041409
    %v84 = vsel %vm83, %v82, %v81
    %vm85 = vcmask 1024
    %86 = vst.msk [vmem:[#allocation2] sm:$0x3] %vm85, %v84
    %v87 = vld [vmem:[%s1] sm:$0xff]
    %v88 = vld [vmem:[%s1 + $0x8] sm:$0xff]
    %v89 = vld [vmem:[%s4] sm:$0xff]
    %v90 = vld [vmem:[%s4 + $0x8] sm:$0xff]
    %vm91 = vcmp.eq.f32.partialorder %v89, 0.0
    %vm92 = vcmp.eq.f32.partialorder %v90, 0.0
    %v93 = vsel %vm91, 1, 0
    %v94 = vsel %vm92, 1, 0
    %95 = vset.pattern.permute.xlu0 0
    %96 = vperm.xlu0 %95, %v93
    %v97 = vpop.permute.xlu0 %96
    %98 = vset.pattern.permute.xlu0 0
    %99 = vperm.xlu0 %98, %v94
    %v100 = vpop.permute.xlu0 %99
    %vm101 = vcmp.eq.s32.totalorder %v97, 1
    %vm102 = vcmp.eq.s32.totalorder %v100, 1
    %v103 = vsel %vm101, -10000.0, %v87
    %v104 = vsel %vm102, -10000.0, %v88
    %v105 = vsel %vm44, %v103, -inf
    %v106 = vrot.slane %v105, 4
    %v107 = vmax.f32 %v105, %v106
    %v108 = vrot.slane %v107, 2
    %v109 = vmax.f32 %v107, %v108
    %v110 = vrot.slane %v109, 1
    %v111 = vmax.f32 %v109, %v110
    %v112 = vsel %vm44, %v104, -inf
    %v113 = vrot.slane %v112, 4
    %v114 = vmax.f32 %v112, %v113
    %v115 = vrot.slane %v114, 2
    %v116 = vmax.f32 %v114, %v115
    %v117 = vrot.slane %v116, 1
    %v118 = vmax.f32 %v116, %v117
    %v119 = vcvt.s32.f32 %v93
    %v120 = vcvt.s32.f32 %v94
    %v121 = vsel %vm61, %v119, -inf
    %v122 = vrot.slane %v121, 4
    %v123 = vmax.f32 %v121, %v122
    %v124 = vrot.slane %v123, 2
    %v125 = vmax.f32 %v123, %v124
    %v126 = vrot.slane %v125, 1
    %v127 = vmax.f32 %v125, %v126
    %v128 = vsel %vm61, %v120, -inf
    %v129 = vrot.slane %v128, 4
    %v130 = vmax.f32 %v128, %v129
    %v131 = vrot.slane %v130, 2
    %v132 = vmax.f32 %v130, %v131
    %v133 = vrot.slane %v132, 1
    %v134 = vmax.f32 %v132, %v133
    %135 = vst.msk [vmem:[%s6 + $0x1] sm:$0x1] %vm76, %v111
    %136 = vst.msk [vmem:[%s6 + $0x5] sm:$0x1] %vm76, %v118
    %vm137 = vcmp.gt.f32.partialorder %v127, 0.5
    %vm138 = vcmp.gt.f32.partialorder %v134, 0.5
    %v139 = vsel %vm137, 1, 0
    %v140 = vsel %vm138, 1, 0
    %v141 = vsel %vm83, %v140, %v139
    %142 = vrot.lane.b32.xlu0 %v141, 1
    %v143 = vpop.permute.xlu0 %142
    %vm144 = vcmask 9224
    %145 = vst.msk [vmem:[#allocation2] sm:$0x3] %vm144, %v143
    %v146 = vld [vmem:[%s2] sm:$0xff]
    %v147 = vld [vmem:[%s2 + $0x8] sm:$0xff]
    %v148 = vld [vmem:[%s5] sm:$0xff]
    %v149 = vld [vmem:[%s5 + $0x8] sm:$0xff]
    %vm150 = vcmp.eq.f32.partialorder %v148, 0.0
    %vm151 = vcmp.eq.f32.partialorder %v149, 0.0
    %v152 = vsel %vm150, 1, 0
    %v153 = vsel %vm151, 1, 0
    %154 = vset.pattern.permute.xlu0 0
    %155 = vperm.xlu0 %154, %v152
    %v156 = vpop.permute.xlu0 %155
    %157 = vset.pattern.permute.xlu0 0
    %158 = vperm.xlu0 %157, %v153
    %v159 = vpop.permute.xlu0 %158
    %vm160 = vcmp.eq.s32.totalorder %v156, 1
    %vm161 = vcmp.eq.s32.totalorder %v159, 1
    %v162 = vsel %vm160, -10000.0, %v146
    %v163 = vsel %vm161, -10000.0, %v147
    %v164 = vsel %vm44, %v162, -inf
    %v165 = vrot.slane %v164, 4
    %v166 = vmax.f32 %v164, %v165
    %v167 = vrot.slane %v166, 2
    %v168 = vmax.f32 %v166, %v167
    %v169 = vrot.slane %v168, 1
    %v170 = vmax.f32 %v168, %v169
    %v171 = vsel %vm44, %v163, -inf
    %v172 = vrot.slane %v171, 4
    %v173 = vmax.f32 %v171, %v172
    %v174 = vrot.slane %v173, 2
    %v175 = vmax.f32 %v173, %v174
    %v176 = vrot.slane %v175, 1
    %v177 = vmax.f32 %v175, %v176
    %v178 = vcvt.s32.f32 %v152
    %v179 = vcvt.s32.f32 %v153
    %v180 = vsel %vm61, %v178, -inf
    %v181 = vrot.slane %v180, 4
    %v182 = vmax.f32 %v180, %v181
    %v183 = vrot.slane %v182, 2
    %v184 = vmax.f32 %v182, %v183
    %v185 = vrot.slane %v184, 1
    %v186 = vmax.f32 %v184, %v185
    %v187 = vsel %vm61, %v179, -inf
    %v188 = vrot.slane %v187, 4
    %v189 = vmax.f32 %v187, %v188
    %v190 = vrot.slane %v189, 2
    %v191 = vmax.f32 %v189, %v190
    %v192 = vrot.slane %v191, 1
    %v193 = vmax.f32 %v191, %v192
    %194 = vst.msk [vmem:[%s6 + $0x2] sm:$0x1] %vm76, %v170
    %195 = vst.msk [vmem:[%s6 + $0x6] sm:$0x1] %vm76, %v177
    %vm196 = vcmp.gt.f32.partialorder %v186, 0.5
    %vm197 = vcmp.gt.f32.partialorder %v193, 0.5
    %v198 = vsel %vm196, 1, 0
    %v199 = vsel %vm197, 1, 0
    %v200 = vsel %vm83, %v199, %v198
    %201 = vrot.lane.b32.xlu0 %v200, 2
    %v202 = vpop.permute.xlu0 %201
    %vm203 = vcmask 17424
    %204 = vst.msk [vmem:[#allocation2] sm:$0x3] %vm203, %v202
    // Predicated region
    $region26: #{tpu_custom_call.1} parent=1 // pred_check
      _
    $region27: #{tpu_custom_call.1} parent=1 // pred_check_branch
      %206 = sbr.rel (0) target = $region29
    $region28: #{tpu_custom_call.1} parent=1 // pred_region
      _
    $region29: #{tpu_custom_call.1} parent=1 // pred_fallthru
      _
    // Predicated region
    $region30: #{tpu_custom_call.1} parent=1 // pred_check
      _
    $region31: #{tpu_custom_call.1} parent=1 // pred_check_branch
      %208 = sbr.rel (0) target = $region33
    $region32: #{tpu_custom_call.1} parent=1 // pred_region
      %210 = vsyncadd [#allocation3], 0
      %s212 = sshll.u32 [#allocation2], 4
      %s213 = int_to_ptr.vmem [resolvable:$true] %s212
      %s214 = sshll.u32 %s7, 4
      %s215 = int_to_ptr.hbm [resolvable:$true] %s214
      %217 = dma.vmem_to_hbm [thread:$0]  %s213, 32, %s215, [#allocation3]
    $region33: #{tpu_custom_call.1} parent=1 // pred_fallthru
      _
    // Predicated region
    $region34: #{tpu_custom_call.1} parent=1 // pred_check
      _
    $region35: #{tpu_custom_call.1} parent=1 // pred_check_branch
      %219 = sbr.rel (0) target = $region37
    $region36: #{tpu_custom_call.1} parent=1 // pred_region
      _
    $region37: #{tpu_custom_call.1} parent=1 // pred_fallthru
      _
    // Predicated region
    $region38: #{tpu_custom_call.1} parent=1 // pred_check
      _
    $region39: #{tpu_custom_call.1} parent=1 // pred_check_branch
      %221 = sbr.rel (0) target = $region41
    $region40: #{tpu_custom_call.1} parent=1 // pred_region
      %223 = dma.done [#allocation3], 32
    $region41: #{tpu_custom_call.1} parent=1 // pred_fallthru
      _
    %224 = vsyncpa [#allocation3], 1

</llo_original>
